<compile_context>
chip_gen: v6e
topology: v6e:2x2x1
jax: 0.10.0
libtpu: 0.0.40
codegen_flags: <defaults>
</compile_context>

<pallas_src>
import functools

import jax
import jax.numpy as jnp
from jax import lax
from jax.experimental import pallas as pl
from jax.experimental.pallas import tpu as pltpu


def _round_up(n, m):
    return (n + m - 1) // m * m


def _vmem_limit_bytes():
    """Generation-aware scoped-VMEM budget (v7x: 64 MiB phys, v5e/v6e: 128 MiB)."""
    cap = None
    try:
        cap = pltpu.get_tpu_info().vmem_capacity_bytes
    except Exception:
        cap = None
    if cap is None:
        cap = 64 * 1024 * 1024
    if cap <= 64 * 1024 * 1024:
        return 36 * 1024 * 1024
    return min(cap - 32 * 1024 * 1024, 100 * 1024 * 1024)


def _conv1d_gn_mish_kernel(xpad_ref, w_ref, b_ref, gamma_ref, beta_ref,
                           gt_ref, gm_ref, out_ref, acc_ref,
                           *, kernel_size, L, eps):
    # xpad_ref: (1, C_in, Lp_al)            w_ref: (k, C_out, C_in)
    # b_ref/gamma_ref/beta_ref: (C_out, 1)  gt_ref: (G, C_out)  gm_ref: (C_out, G)
    # out_ref: (1, C_out, L)                acc_ref: (C_out, L_pad) f32 scratch
    L_pad = acc_ref.shape[1]

    x = xpad_ref[0]                                     # (C_in, Lp_al), native dtype

    # ---- Conv1d: k accumulating MXU matmuls (no im2col copy) ----------------
    acc = jnp.dot(w_ref[0], x[:, 0:L_pad], preferred_element_type=jnp.float32)
    for t in range(1, kernel_size):
        acc = acc + jnp.dot(w_ref[t], x[:, t:t + L_pad],
                            preferred_element_type=jnp.float32)

    # ---- Mask lane padding in place (padded-lane conv tail is NOT zero) -----
    if L_pad != L:
        mask = (lax.broadcasted_iota(jnp.int32, (1, L_pad), 1)
                < L).astype(jnp.float32)                # (1, L_pad)
        acc = acc * mask
    else:
        mask = None

    acc_ref[...] = acc           # keep conv output resident for the epilogue

    # ---- GroupNorm stats: skinny group projections, bias folded -------------
    # Pre-bias channel sums; bias contributes exactly L*b to each channel sum.
    ch_sum = jnp.sum(acc, axis=1, keepdims=True) + float(L) * b_ref[...]
    g_sum = jnp.dot(gt_ref[...], ch_sum, preferred_element_type=jnp.float32)
    mean_c = jnp.dot(gm_ref[...], g_sum, preferred_element_type=jnp.float32)

    # (conv + bias) - group_mean == acc - col_off
    col_off = mean_c - b_ref[...]                       # (C_out, 1)

    d = acc - col_off                                   # centered (stable variance)
    if mask is not None:
        d = d * mask
    ch_sqsum = jnp.sum(d * d, axis=1, keepdims=True)
    g_sqsum = jnp.dot(gt_ref[...], ch_sqsum, preferred_element_type=jnp.float32)
    var_c = jnp.dot(gm_ref[...], g_sqsum, preferred_element_type=jnp.float32)

    # Folded affine: out = (acc - col_off) * scale + shift, then Mish.
    scale = gamma_ref[...] * lax.rsqrt(var_c + eps)     # (C_out, 1)
    shift = beta_ref[...]                               # (C_out, 1)

    def _norm_mish(a_chunk):
        y = (a_chunk - col_off) * scale + shift
        # Mish(y) = y * tanh(softplus(y)) = y * u / (u + 2),  u = e^y (e^y + 2)
        t = jnp.exp(jnp.minimum(y, 20.0))               # single EUP transcendental
        u = t * (t + 2.0)
        v = u + 2.0
        r = pl.reciprocal(v, approx=True)               # EUP vrcp
        r = r * (2.0 - v * r)                           # one Newton step -> ~f32 exact
        return jnp.where(y > 20.0, y, y * u * r)

    # ---- Normalize + Mish epilogue: lane chunks, only valid lanes stored ----
    CH = 512
    n_full = L // CH
    rem = L - n_full * CH

    if n_full > 0:
        def body(i, carry):
            c0 = pl.multiple_of(i * CH, CH)
            a_chunk = acc_ref[:, pl.ds(c0, CH)]
            out_ref[0, :, pl.ds(c0, CH)] = _norm_mish(a_chunk).astype(out_ref.dtype)
            return carry
        lax.fori_loop(0, n_full, body, 0, unroll=(n_full <= 4))

    if rem > 0:
        c0 = n_full * CH                                 # static
        a_chunk = acc_ref[:, c0:c0 + rem]
        out_ref[0, :, c0:c0 + rem] = _norm_mish(a_chunk).astype(out_ref.dtype)


def conv1d_block(x, weight, bias, gamma, beta, *, kernel_size, n_groups,
                 eps=1e-5, conv_operand_dtype=None):
    """x: (B, C_in, L); weight: (C_out, C_in, k); bias/gamma/beta: (C_out,).

    conv_operand_dtype: optional dtype (e.g. jnp.bfloat16) for the conv matmul
    operands (f32 accumulation is kept). Mainly useful on v5e where f32xf32 MXU
    is multi-pass emulation; GroupNorm renormalizes so impact is usually small.
    """
    B, C_in, L = x.shape
    C_out = weight.shape[0]
    # PyTorch Conv1d(padding=k//2) with even k yields L+1 outputs; only odd k
    # keeps the length. Guard against silently dropping a position.
    assert kernel_size % 2 == 1, "only odd kernel_size matches 'same' length"
    assert C_out % n_groups == 0, "out_channels must be divisible by n_groups"
    p = kernel_size // 2

    out_dtype = x.dtype
    op_dtype = out_dtype if conv_operand_dtype is None else conv_operand_dtype

    L_pad = _round_up(L, 128)                   # lane-aligned internal compute width
    Lp_al = _round_up(L_pad + 2 * p, 128)       # lane-aligned padded input length

    # 'same' zero padding (p on the left) + alignment zeros on the right.
    xpad = jnp.pad(x.astype(op_dtype), ((0, 0), (0, 0), (p, Lp_al - L - p)))

    # Weight (C_out, C_in, k) -> (k, C_out, C_in): per-tap leading-dim index.
    w3 = jnp.transpose(weight, (2, 0, 1)).astype(op_dtype)

    b2 = bias.reshape(C_out, 1).astype(jnp.float32)
    g2 = gamma.reshape(C_out, 1).astype(jnp.float32)
    be2 = beta.reshape(C_out, 1).astype(jnp.float32)

    # Skinny group projections instead of a dense (C_out, C_out) matrix:
    #   Gt[g, c] = 1 if channel c belongs to group g
    #   Gm[c, g] = Gt[g, c] / (cpg * L)    (normalization folded here)
    cpg = C_out // n_groups
    grp = jnp.arange(C_out) // cpg
    onehot = (grp[None, :] == jnp.arange(n_groups)[:, None]).astype(jnp.float32)
    Gt = onehot                                   # (n_groups, C_out)
    Gm = onehot.T / float(cpg * L)                # (C_out, n_groups)

    kern = functools.partial(_conv1d_gn_mish_kernel,
                             kernel_size=kernel_size, L=L, eps=float(eps))

    # NOTE: for the large-C / small-L regime a channels-to-lanes layout
    # ((B, L, C) with C_out on lanes) is the bigger win; kept NCL here to match
    # the module's layout and keep a single code path.
    out = pl.pallas_call(
        kern,
        out_shape=jax.ShapeDtypeStruct((B, C_out, L), out_dtype),
        grid_spec=pltpu.PrefetchScalarGridSpec(
            num_scalar_prefetch=0,
            grid=(B,),
            in_specs=[
                pl.BlockSpec((1, C_in, Lp_al), lambda b: (b, 0, 0)),
                pl.BlockSpec((kernel_size, C_out, C_in), lambda b: (0, 0, 0)),
                pl.BlockSpec((C_out, 1), lambda b: (0, 0)),
                pl.BlockSpec((C_out, 1), lambda b: (0, 0)),
                pl.BlockSpec((C_out, 1), lambda b: (0, 0)),
                pl.BlockSpec((n_groups, C_out), lambda b: (0, 0)),
                pl.BlockSpec((C_out, n_groups), lambda b: (0, 0)),
            ],
            out_specs=pl.BlockSpec((1, C_out, L), lambda b: (b, 0, 0)),
            scratch_shapes=[pltpu.VMEM((C_out, L_pad), jnp.float32)],
        ),
        compiler_params=pltpu.CompilerParams(
            # Batches are independent -> shard across TensorCores on v7x.
            dimension_semantics=("parallel",),
            vmem_limit_bytes=_vmem_limit_bytes(),
        ),
    )(xpad, w3, b2, g2, be2, Gt, Gm)
    return out


def _reference(x, weight, bias, gamma, beta, *, kernel_size, n_groups, eps=1e-5):
    p = kernel_size // 2
    y = lax.conv_general_dilated(
        x, weight, window_strides=(1,), padding=[(p, p)],
        dimension_numbers=("NCH", "OIH", "NCH"))
    y = y + bias[None, :, None]
    B, C, L = y.shape
    yg = y.reshape(B, n_groups, C // n_groups * L)
    mean = yg.mean(axis=-1, keepdims=True)
    var = ((yg - mean) ** 2).mean(axis=-1, keepdims=True)
    yn = ((yg - mean) / jnp.sqrt(var + eps)).reshape(B, C, L)
    yn = yn * gamma[None, :, None] + beta[None, :, None]
    return yn * jnp.tanh(jax.nn.softplus(yn))


if __name__ == "__main__":
    def _run_case(key, B, C_in, C_out, L, K, G):
        kx, kw, kb, kg, kbe = jax.random.split(key, 5)
        x = jax.random.normal(kx, (B, C_in, L), dtype=jnp.float32)
        weight = jax.random.normal(kw, (C_out, C_in, K), dtype=jnp.float32) * 0.2
        bias = jax.random.normal(kb, (C_out,), dtype=jnp.float32) * 0.1
        gamma = 1.0 + 0.1 * jax.random.normal(kg, (C_out,), dtype=jnp.float32)
        beta = 0.1 * jax.random.normal(kbe, (C_out,), dtype=jnp.float32)

        out = conv1d_block(x, weight, bias, gamma, beta,
                           kernel_size=K, n_groups=G)
        out = jax.block_until_ready(out)

        ref = _reference(x, weight, bias, gamma, beta, kernel_size=K, n_groups=G)
        assert out.shape == ref.shape, "shape mismatch vs reference"
        assert jnp.allclose(out, ref, atol=2e-4, rtol=2e-4), (
            f"mismatch vs reference (B={B}, C_in={C_in}, C_out={C_out}, "
            f"L={L}, K={K}, G={G})")

    key = jax.random.PRNGKey(0)
    k1, k2 = jax.random.split(key)
    # Module-scale small case (L < 128 -> single static epilogue chunk).
    _run_case(k1, B=2, C_in=4, C_out=16, L=16, K=3, G=8)
    # Longer-L case exercising the fori_loop epilogue, remainder chunk,
    # lane-pad masking, 5-tap conv and a different group count.
    _run_case(k2, B=1, C_in=3, C_out=16, L=531, K=5, G=4)

    print("KERNEL_OK")
</pallas_src>

<mosaic_0001>
module attributes {stable_mosaic.version = 11 : i64} {
  func.func @_conv1d_gn_mish_kernel(%arg0: i32, %arg1: memref<1x4x256xf32, #tpu.memory_space<vmem>>, %arg2: memref<3x16x4xf32, #tpu.memory_space<vmem>>, %arg3: memref<16x1xf32, #tpu.memory_space<vmem>>, %arg4: memref<16x1xf32, #tpu.memory_space<vmem>>, %arg5: memref<16x1xf32, #tpu.memory_space<vmem>>, %arg6: memref<8x16xf32, #tpu.memory_space<vmem>>, %arg7: memref<16x8xf32, #tpu.memory_space<vmem>>, %arg8: memref<1x16x16xf32, #tpu.memory_space<vmem>>, %arg9: memref<16x128xf32, #tpu.memory_space<vmem>>) attributes {dimension_semantics = [#tpu.dimension_semantics<parallel>], iteration_bounds = array<i64: 2>, scalar_prefetch = 0 : i64, scratch_operands = 1 : i64, tpu.core_type = #tpu.core_type<tc>, window_params = [{transform_indices = @transform_0, window_bounds = array<i64: 1, 4, 256>}, {pipeline_mode = #tpu.pipeline_mode<synchronous>, transform_indices = @transform_1, window_bounds = array<i64: 3, 16, 4>}, {pipeline_mode = #tpu.pipeline_mode<synchronous>, transform_indices = @transform_2, window_bounds = array<i64: 16, 1>}, {pipeline_mode = #tpu.pipeline_mode<synchronous>, transform_indices = @transform_3, window_bounds = array<i64: 16, 1>}, {pipeline_mode = #tpu.pipeline_mode<synchronous>, transform_indices = @transform_4, window_bounds = array<i64: 16, 1>}, {pipeline_mode = #tpu.pipeline_mode<synchronous>, transform_indices = @transform_5, window_bounds = array<i64: 8, 16>}, {pipeline_mode = #tpu.pipeline_mode<synchronous>, transform_indices = @transform_6, window_bounds = array<i64: 16, 8>}, {transform_indices = @transform_7, window_bounds = array<i64: 1, 16, 16>}]} {
    %c0 = arith.constant 0 : index
    %c0_0 = arith.constant 0 : index
    %c0_1 = arith.constant 0 : index
    %0 = vector.load %arg1[%c0, %c0_0, %c0_1] : memref<1x4x256xf32, #tpu.memory_space<vmem>>, vector<1x4x256xf32>
    %1 = vector.shape_cast %0 : vector<1x4x256xf32> to vector<4x256xf32>
    %c0_2 = arith.constant 0 : index
    %c0_3 = arith.constant 0 : index
    %c0_4 = arith.constant 0 : index
    %2 = vector.load %arg2[%c0_2, %c0_3, %c0_4] : memref<3x16x4xf32, #tpu.memory_space<vmem>>, vector<1x16x4xf32>
    %3 = vector.shape_cast %2 : vector<1x16x4xf32> to vector<16x4xf32>
    %4 = vector.extract_strided_slice %1 {offsets = [0, 0], sizes = [4, 128], strides = [1, 1]} : vector<4x256xf32> to vector<4x128xf32>
    %cst = arith.constant dense<0.000000e+00> : vector<16x128xf32>
    %5 = tpu.matmul %3, %4, %cst {dimension_numbers = #tpu.dot_dimension_numbers<[1], [0], [0], [1], [0, 0, 1, 1], [], []>} : vector<16x4xf32>, vector<4x128xf32>, vector<16x128xf32> -> vector<16x128xf32>
    %c1 = arith.constant 1 : index
    %c0_5 = arith.constant 0 : index
    %c0_6 = arith.constant 0 : index
    %6 = vector.load %arg2[%c1, %c0_5, %c0_6] : memref<3x16x4xf32, #tpu.memory_space<vmem>>, vector<1x16x4xf32>
    %7 = vector.shape_cast %6 : vector<1x16x4xf32> to vector<16x4xf32>
    %8 = vector.extract_strided_slice %1 {offsets = [0, 1], sizes = [4, 128], strides = [1, 1]} : vector<4x256xf32> to vector<4x128xf32>
    %cst_7 = arith.constant dense<0.000000e+00> : vector<16x128xf32>
    %9 = tpu.matmul %7, %8, %cst_7 {dimension_numbers = #tpu.dot_dimension_numbers<[1], [0], [0], [1], [0, 0, 1, 1], [], []>} : vector<16x4xf32>, vector<4x128xf32>, vector<16x128xf32> -> vector<16x128xf32>
    %10 = arith.addf %5, %9 : vector<16x128xf32>
    %c2 = arith.constant 2 : index
    %c0_8 = arith.constant 0 : index
    %c0_9 = arith.constant 0 : index
    %11 = vector.load %arg2[%c2, %c0_8, %c0_9] : memref<3x16x4xf32, #tpu.memory_space<vmem>>, vector<1x16x4xf32>
    %12 = vector.shape_cast %11 : vector<1x16x4xf32> to vector<16x4xf32>
    %13 = vector.extract_strided_slice %1 {offsets = [0, 2], sizes = [4, 128], strides = [1, 1]} : vector<4x256xf32> to vector<4x128xf32>
    %cst_10 = arith.constant dense<0.000000e+00> : vector<16x128xf32>
    %14 = tpu.matmul %12, %13, %cst_10 {dimension_numbers = #tpu.dot_dimension_numbers<[1], [0], [0], [1], [0, 0, 1, 1], [], []>} : vector<16x4xf32>, vector<4x128xf32>, vector<16x128xf32> -> vector<16x128xf32>
    %15 = arith.addf %10, %14 : vector<16x128xf32>
    %16 = tpu.iota {dimensions = array<i32: 1>} : vector<1x128xi32>
    %c16_i32 = arith.constant 16 : i32
    %17 = vector.broadcast %c16_i32 : i32 to vector<1x128xi32>
    %18 = arith.cmpi slt, %16, %17 : vector<1x128xi32>
    %19 = arith.extui %18 : vector<1x128xi1> to vector<1x128xi32>
    %20 = arith.sitofp %19 : vector<1x128xi32> to vector<1x128xf32>
    %21 = vector.broadcast %20 : vector<1x128xf32> to vector<16x128xf32>
    %22 = arith.mulf %15, %21 : vector<16x128xf32>
    %c0_11 = arith.constant 0 : index
    %c0_12 = arith.constant 0 : index
    %23 = vector.load %arg9[%c0_11, %c0_12] : memref<16x128xf32, #tpu.memory_space<vmem>>, vector<16x128xf32>
    tpu.vector_store %arg9[%c0_11, %c0_12], %22 {strides = array<i32>} : memref<16x128xf32, #tpu.memory_space<vmem>>, vector<16x128xf32>,
    %cst_13 = arith.constant dense<0.000000e+00> : vector<16xf32>
    %24 = vector.multi_reduction <add>, %22, %cst_13 [1] : vector<16x128xf32> to vector<16xf32>
    %25 = vector.shape_cast %24 : vector<16xf32> to vector<16x1xf32>
    %c0_14 = arith.constant 0 : index
    %c0_15 = arith.constant 0 : index
    %26 = vector.load %arg3[%c0_14, %c0_15] : memref<16x1xf32, #tpu.memory_space<vmem>>, vector<16x1xf32>
    %cst_16 = arith.constant 1.600000e+01 : f32
    %27 = vector.broadcast %cst_16 : f32 to vector<16x1xf32>
    %28 = arith.mulf %27, %26 : vector<16x1xf32>
    %29 = arith.addf %25, %28 : vector<16x1xf32>
    %c0_17 = arith.constant 0 : index
    %c0_18 = arith.constant 0 : index
    %30 = vector.load %arg6[%c0_17, %c0_18] : memref<8x16xf32, #tpu.memory_space<vmem>>, vector<8x16xf32>
    %cst_19 = arith.constant dense<0.000000e+00> : vector<8x1xf32>
    %31 = tpu.matmul %30, %29, %cst_19 {dimension_numbers = #tpu.dot_dimension_numbers<[1], [0], [0], [1], [0, 0, 1, 1], [], []>} : vector<8x16xf32>, vector<16x1xf32>, vector<8x1xf32> -> vector<8x1xf32>
    %c0_20 = arith.constant 0 : index
    %c0_21 = arith.constant 0 : index
    %32 = vector.load %arg7[%c0_20, %c0_21] : memref<16x8xf32, #tpu.memory_space<vmem>>, vector<16x8xf32>
    %cst_22 = arith.constant dense<0.000000e+00> : vector<16x1xf32>
    %33 = tpu.matmul %32, %31, %cst_22 {dimension_numbers = #tpu.dot_dimension_numbers<[1], [0], [0], [1], [0, 0, 1, 1], [], []>} : vector<16x8xf32>, vector<8x1xf32>, vector<16x1xf32> -> vector<16x1xf32>
    %c0_23 = arith.constant 0 : index
    %c0_24 = arith.constant 0 : index
    %34 = vector.load %arg3[%c0_23, %c0_24] : memref<16x1xf32, #tpu.memory_space<vmem>>, vector<16x1xf32>
    %35 = arith.subf %33, %34 : vector<16x1xf32>
    %36 = vector.broadcast %35 : vector<16x1xf32> to vector<16x128xf32>
    %37 = arith.subf %22, %36 : vector<16x128xf32>
    %38 = vector.broadcast %20 : vector<1x128xf32> to vector<16x128xf32>
    %39 = arith.mulf %37, %38 : vector<16x128xf32>
    %40 = arith.mulf %39, %39 : vector<16x128xf32>
    %cst_25 = arith.constant dense<0.000000e+00> : vector<16xf32>
    %41 = vector.multi_reduction <add>, %40, %cst_25 [1] : vector<16x128xf32> to vector<16xf32>
    %42 = vector.shape_cast %41 : vector<16xf32> to vector<16x1xf32>
    %c0_26 = arith.constant 0 : index
    %c0_27 = arith.constant 0 : index
    %43 = vector.load %arg6[%c0_26, %c0_27] : memref<8x16xf32, #tpu.memory_space<vmem>>, vector<8x16xf32>
    %cst_28 = arith.constant dense<0.000000e+00> : vector<8x1xf32>
    %44 = tpu.matmul %43, %42, %cst_28 {dimension_numbers = #tpu.dot_dimension_numbers<[1], [0], [0], [1], [0, 0, 1, 1], [], []>} : vector<8x16xf32>, vector<16x1xf32>, vector<8x1xf32> -> vector<8x1xf32>
    %c0_29 = arith.constant 0 : index
    %c0_30 = arith.constant 0 : index
    %45 = vector.load %arg7[%c0_29, %c0_30] : memref<16x8xf32, #tpu.memory_space<vmem>>, vector<16x8xf32>
    %cst_31 = arith.constant dense<0.000000e+00> : vector<16x1xf32>
    %46 = tpu.matmul %45, %44, %cst_31 {dimension_numbers = #tpu.dot_dimension_numbers<[1], [0], [0], [1], [0, 0, 1, 1], [], []>} : vector<16x8xf32>, vector<8x1xf32>, vector<16x1xf32> -> vector<16x1xf32>
    %c0_32 = arith.constant 0 : index
    %c0_33 = arith.constant 0 : index
    %47 = vector.load %arg4[%c0_32, %c0_33] : memref<16x1xf32, #tpu.memory_space<vmem>>, vector<16x1xf32>
    %cst_34 = arith.constant 9.99999974E-6 : f32
    %48 = vector.broadcast %cst_34 : f32 to vector<16x1xf32>
    %49 = arith.addf %46, %48 : vector<16x1xf32>
    %50 = math.rsqrt %49 : vector<16x1xf32>
    %51 = arith.mulf %47, %50 : vector<16x1xf32>
    %c0_35 = arith.constant 0 : index
    %c0_36 = arith.constant 0 : index
    %52 = vector.load %arg5[%c0_35, %c0_36] : memref<16x1xf32, #tpu.memory_space<vmem>>, vector<16x1xf32>
    %c0_37 = arith.constant 0 : index
    %c0_38 = arith.constant 0 : index
    %53 = vector.load %arg9[%c0_37, %c0_38] : memref<16x128xf32, #tpu.memory_space<vmem>>, vector<16x16xf32>
    %54 = vector.broadcast %35 : vector<16x1xf32> to vector<16x16xf32>
    %55 = arith.subf %53, %54 : vector<16x16xf32>
    %56 = vector.broadcast %51 : vector<16x1xf32> to vector<16x16xf32>
    %57 = arith.mulf %55, %56 : vector<16x16xf32>
    %58 = vector.broadcast %52 : vector<16x1xf32> to vector<16x16xf32>
    %59 = arith.addf %57, %58 : vector<16x16xf32>
    %cst_39 = arith.constant 2.000000e+01 : f32
    %60 = vector.broadcast %cst_39 : f32 to vector<16x16xf32>
    %61 = arith.minimumf %59, %60 : vector<16x16xf32>
    %62 = math.exp %61 : vector<16x16xf32>
    %cst_40 = arith.constant 2.000000e+00 : f32
    %63 = vector.broadcast %cst_40 : f32 to vector<16x16xf32>
    %64 = arith.addf %62, %63 : vector<16x16xf32>
    %65 = arith.mulf %62, %64 : vector<16x16xf32>
    %cst_41 = arith.constant 2.000000e+00 : f32
    %66 = vector.broadcast %cst_41 : f32 to vector<16x16xf32>
    %67 = arith.addf %65, %66 : vector<16x16xf32>
    %68 = tpu.reciprocal %67 {approx = true} : vector<16x16xf32> -> vector<16x16xf32>
    %69 = arith.mulf %67, %68 : vector<16x16xf32>
    %cst_42 = arith.constant 2.000000e+00 : f32
    %70 = vector.broadcast %cst_42 : f32 to vector<16x16xf32>
    %71 = arith.subf %70, %69 : vector<16x16xf32>
    %72 = arith.mulf %68, %71 : vector<16x16xf32>
    %cst_43 = arith.constant 2.000000e+01 : f32
    %73 = vector.broadcast %cst_43 : f32 to vector<16x16xf32>
    %74 = arith.cmpf ogt, %59, %73 : vector<16x16xf32>
    %75 = arith.mulf %59, %65 : vector<16x16xf32>
    %76 = arith.mulf %75, %72 : vector<16x16xf32>
    %77 = arith.select %74, %59, %76 : vector<16x16xi1>, vector<16x16xf32>
    %c0_44 = arith.constant 0 : index
    %c0_45 = arith.constant 0 : index
    %c0_46 = arith.constant 0 : index
    %78 = vector.load %arg8[%c0_44, %c0_45, %c0_46] : memref<1x16x16xf32, #tpu.memory_space<vmem>>, vector<1x16x16xf32>
    %79 = vector.shape_cast %78 : vector<1x16x16xf32> to vector<16x16xf32>
    %80 = vector.shape_cast %77 : vector<16x16xf32> to vector<1x16x16xf32>
    tpu.vector_store %arg8[%c0_44, %c0_45, %c0_46], %80 {strides = array<i32>} : memref<1x16x16xf32, #tpu.memory_space<vmem>>, vector<1x16x16xf32>,
    return
  }
  func.func @transform_0(%arg0: i32) -> (i32, i32, i32) {
    %c0_i32 = arith.constant 0 : i32
    %c0_i32_0 = arith.constant 0 : i32
    %c0_i32_1 = arith.constant 0 : i32
    return %arg0, %c0_i32, %c0_i32_0 : i32, i32, i32
  }
  func.func @transform_1(%arg0: i32) -> (i32, i32, i32) {
    %c0_i32 = arith.constant 0 : i32
    %c0_i32_0 = arith.constant 0 : i32
    %c0_i32_1 = arith.constant 0 : i32
    %c0_i32_2 = arith.constant 0 : i32
    return %c0_i32, %c0_i32_0, %c0_i32_1 : i32, i32, i32
  }
  func.func @transform_2(%arg0: i32) -> (i32, i32) {
    %c0_i32 = arith.constant 0 : i32
    %c0_i32_0 = arith.constant 0 : i32
    %c0_i32_1 = arith.constant 0 : i32
    return %c0_i32, %c0_i32_0 : i32, i32
  }
  func.func @transform_3(%arg0: i32) -> (i32, i32) {
    %c0_i32 = arith.constant 0 : i32
    %c0_i32_0 = arith.constant 0 : i32
    %c0_i32_1 = arith.constant 0 : i32
    return %c0_i32, %c0_i32_0 : i32, i32
  }
  func.func @transform_4(%arg0: i32) -> (i32, i32) {
    %c0_i32 = arith.constant 0 : i32
    %c0_i32_0 = arith.constant 0 : i32
    %c0_i32_1 = arith.constant 0 : i32
    return %c0_i32, %c0_i32_0 : i32, i32
  }
  func.func @transform_5(%arg0: i32) -> (i32, i32) {
    %c0_i32 = arith.constant 0 : i32
    %c0_i32_0 = arith.constant 0 : i32
    %c0_i32_1 = arith.constant 0 : i32
    return %c0_i32, %c0_i32_0 : i32, i32
  }
  func.func @transform_6(%arg0: i32) -> (i32, i32) {
    %c0_i32 = arith.constant 0 : i32
    %c0_i32_0 = arith.constant 0 : i32
    %c0_i32_1 = arith.constant 0 : i32
    return %c0_i32, %c0_i32_0 : i32, i32
  }
  func.func @transform_7(%arg0: i32) -> (i32, i32, i32) {
    %c0_i32 = arith.constant 0 : i32
    %c0_i32_0 = arith.constant 0 : i32
    %c0_i32_1 = arith.constant 0 : i32
    return %arg0, %c0_i32, %c0_i32_0 : i32, i32, i32
  }
}

</mosaic_0001>

<llo_original>
// kernel: tpu_custom_call.1
$region0: #{tpu_custom_call.1}
  #allocation0 [shape = 'u32[]', space=smem, size = 0x4, offset = 0x4, fixed_abs, tag = 'smem constant byte address 0x4 - core index']
  #allocation1 [shape = 'u32[144,128]{1,0:T(1,128)}', space=vmem, size = 0x12000, scoped, tag = 'internal scratch']
  #allocation2 [shape = 'f32[16,128]{1,0:T(8,128)}', space=vmem, size = 0x2000, scoped, tag = 'scratch operand']
  %s0 = inlined_call_operand.vmem [shape: f32[2,4,256], index: 0, kind: input, shape index: {}]
  %s1 = inlined_call_operand.vmem [shape: f32[3,16,4], index: 1, kind: input, shape index: {}]
  %s2 = inlined_call_operand.vmem [shape: f32[16,1], index: 2, kind: input, shape index: {}]
  %s3 = inlined_call_operand.vmem [shape: f32[16,1], index: 3, kind: input, shape index: {}]
  %s4 = inlined_call_operand.vmem [shape: f32[16,1], index: 4, kind: input, shape index: {}]
  %s5 = inlined_call_operand.vmem [shape: f32[8,16], index: 5, kind: input, shape index: {}]
  %s6 = inlined_call_operand.vmem [shape: f32[16,8], index: 6, kind: input, shape index: {}]
  %s7 = inlined_call_operand.hbm [shape: f32[2,16,16], index: 7, kind: output, shape index: {}]
  %s8 = sld [smem:[#allocation0]]
  $region61: #{tpu_custom_call.1} parent=0
    _
  %s10 = ssub.s32 1, %s8
  %s11 = scalar_select 0, %s10, %s8
  $region1: #{tpu_custom_call.1} parent=0
    #allocation3 [shape = 'u8[16384]{0}', space=vmem, size = 0x4000, scoped, tag = 'output window, operand 0']
    #allocation4 [shape = 's32[2]{0}', space=sflag, size = 0x8, scoped, tag = 'scoped memory for tpu_custom_call.1']
    %12 = vsyncpa [#allocation4], 0
    %s13 = scalar_lea.sflag [#allocation4], 1
    %14 = vsyncpa %s13, 0
    loop: start=0, step=1, limit=4
    $region2: #{tpu_custom_call.1} parent=1 // loop_pre_header
      _
    $region3: #{tpu_custom_call.1} parent=1 // loop_header
      %s16 = sphi 0, %s20
      %p17 = scmp.ge.s32.totalorder %s16, 4
      %s26 = sphi 0, %s28
      %s29 = sphi 0, %s26
      %s30 = sphi 0, %s29
      %s46 = sphi 0, %s30
      %s50 = sphi 0, %s50
      %s52 = sphi 0, %s50
      %s53 = sphi 0, %s52
      %s67 = sphi 0, %s53
      %s71 = sphi 0, %s71
      %s73 = sphi 0, %s71
      %s74 = sphi 0, %s73
      %s88 = sphi 0, %s74
      %s92 = sphi 0, %s92
      %s94 = sphi 0, %s92
      %s95 = sphi 0, %s94
      %s109 = sphi 0, %s95
      %s113 = sphi 0, %s113
      %s115 = sphi 0, %s113
      %s116 = sphi 0, %s115
      %s130 = sphi 0, %s116
      %s134 = sphi 0, %s134
      %s136 = sphi 0, %s134
      %s137 = sphi 0, %s136
      %s151 = sphi 0, %s137
      %s155 = sphi 0, %s155
      %s157 = sphi 0, %s155
      %s158 = sphi 0, %s157
      %s172 = sphi 0, %s158
      %s178 = sphi 0, %s180
      %s181 = sphi 0, %s178
      %s182 = sphi 0, %s181
      %s198 = sphi 0, %s182
    $region4: #{tpu_custom_call.1} parent=1 // loop_header_branch
      %19 = sbr.rel (%p17) target = $region8
    $region5: #{tpu_custom_call.1} parent=1 // loop_body
      %s21 = ssub.s32 %s16, 1
      %s22 = ssub.s32 %s16, 2
      %s23 = sadd.s32 %s16, 1
      %s24 = ssub.s32 %s16, %s23
      %p25 = scmp.eq.s32.totalorder %s24, 0
      %s27 = sadd.s32 %s26, 1
      %s28 = scalar_select %p25, %s26, %s27
      %p31 = pneg %p25
      %p32 = scmp.eq.s32.totalorder %s16, 1
      %p33 = por %p31, %p32
      %p34 = scmp.ne.s32.totalorder %s26, %s29
      %p35 = scmp.eq.s32.totalorder %s16, 0
      %p36 = por %p34, %p35
      %p37 = scmp.ne.s32.totalorder %s26, %s29
      %p38 = scmp.eq.s32.totalorder %s21, 1
      %p39 = por %p37, %p38
      %p40 = scmp.ne.s32.totalorder %s29, %s30
      %p41 = scmp.eq.s32.totalorder %s21, 0
      %p42 = por %p40, %p41
      %p43 = scmp.ne.s32.totalorder %s29, %s30
      %p44 = scmp.eq.s32.totalorder %s22, 1
      %p45 = por %p43, %p44
      %p47 = scmp.ne.s32.totalorder %s30, %s46
      %p48 = scmp.eq.s32.totalorder %s22, 0
      %p49 = por %p47, %p48
      %s51 = sadd.s32 %s50, 1
      %p54 = scmp.eq.s32.totalorder %s16, 1
      %p55 = scmp.ne.s32.totalorder %s50, %s52
      %p56 = scmp.eq.s32.totalorder %s16, 0
      %p57 = por %p55, %p56
      %p58 = scmp.ne.s32.totalorder %s50, %s52
      %p59 = scmp.eq.s32.totalorder %s21, 1
      %p60 = por %p58, %p59
      %p61 = scmp.ne.s32.totalorder %s52, %s53
      %p62 = scmp.eq.s32.totalorder %s21, 0
      %p63 = por %p61, %p62
      %p64 = scmp.ne.s32.totalorder %s52, %s53
      %p65 = scmp.eq.s32.totalorder %s22, 1
      %p66 = por %p64, %p65
      %p68 = scmp.ne.s32.totalorder %s53, %s67
      %p69 = scmp.eq.s32.totalorder %s22, 0
      %p70 = por %p68, %p69
      %s72 = sadd.s32 %s71, 1
      %p75 = scmp.eq.s32.totalorder %s16, 1
      %p76 = scmp.ne.s32.totalorder %s71, %s73
      %p77 = scmp.eq.s32.totalorder %s16, 0
      %p78 = por %p76, %p77
      %p79 = scmp.ne.s32.totalorder %s71, %s73
      %p80 = scmp.eq.s32.totalorder %s21, 1
      %p81 = por %p79, %p80
      %p82 = scmp.ne.s32.totalorder %s73, %s74
      %p83 = scmp.eq.s32.totalorder %s21, 0
      %p84 = por %p82, %p83
      %p85 = scmp.ne.s32.totalorder %s73, %s74
      %p86 = scmp.eq.s32.totalorder %s22, 1
      %p87 = por %p85, %p86
      %p89 = scmp.ne.s32.totalorder %s74, %s88
      %p90 = scmp.eq.s32.totalorder %s22, 0
      %p91 = por %p89, %p90
      %s93 = sadd.s32 %s92, 1
      %p96 = scmp.eq.s32.totalorder %s16, 1
      %p97 = scmp.ne.s32.totalorder %s92, %s94
      %p98 = scmp.eq.s32.totalorder %s16, 0
      %p99 = por %p97, %p98
      %p100 = scmp.ne.s32.totalorder %s92, %s94
      %p101 = scmp.eq.s32.totalorder %s21, 1
      %p102 = por %p100, %p101
      %p103 = scmp.ne.s32.totalorder %s94, %s95
      %p104 = scmp.eq.s32.totalorder %s21, 0
      %p105 = por %p103, %p104
      %p106 = scmp.ne.s32.totalorder %s94, %s95
      %p107 = scmp.eq.s32.totalorder %s22, 1
      %p108 = por %p106, %p107
      %p110 = scmp.ne.s32.totalorder %s95, %s109
      %p111 = scmp.eq.s32.totalorder %s22, 0
      %p112 = por %p110, %p111
      %s114 = sadd.s32 %s113, 1
      %p117 = scmp.eq.s32.totalorder %s16, 1
      %p118 = scmp.ne.s32.totalorder %s113, %s115
      %p119 = scmp.eq.s32.totalorder %s16, 0
      %p120 = por %p118, %p119
      %p121 = scmp.ne.s32.totalorder %s113, %s115
      %p122 = scmp.eq.s32.totalorder %s21, 1
      %p123 = por %p121, %p122
      %p124 = scmp.ne.s32.totalorder %s115, %s116
      %p125 = scmp.eq.s32.totalorder %s21, 0
      %p126 = por %p124, %p125
      %p127 = scmp.ne.s32.totalorder %s115, %s116
      %p128 = scmp.eq.s32.totalorder %s22, 1
      %p129 = por %p127, %p128
      %p131 = scmp.ne.s32.totalorder %s116, %s130
      %p132 = scmp.eq.s32.totalorder %s22, 0
      %p133 = por %p131, %p132
      %s135 = sadd.s32 %s134, 1
      %p138 = scmp.eq.s32.totalorder %s16, 1
      %p139 = scmp.ne.s32.totalorder %s134, %s136
      %p140 = scmp.eq.s32.totalorder %s16, 0
      %p141 = por %p139, %p140
      %p142 = scmp.ne.s32.totalorder %s134, %s136
      %p143 = scmp.eq.s32.totalorder %s21, 1
      %p144 = por %p142, %p143
      %p145 = scmp.ne.s32.totalorder %s136, %s137
      %p146 = scmp.eq.s32.totalorder %s21, 0
      %p147 = por %p145, %p146
      %p148 = scmp.ne.s32.totalorder %s136, %s137
      %p149 = scmp.eq.s32.totalorder %s22, 1
      %p150 = por %p148, %p149
      %p152 = scmp.ne.s32.totalorder %s137, %s151
      %p153 = scmp.eq.s32.totalorder %s22, 0
      %p154 = por %p152, %p153
      %s156 = sadd.s32 %s155, 1
      %p159 = scmp.eq.s32.totalorder %s16, 1
      %p160 = scmp.ne.s32.totalorder %s155, %s157
      %p161 = scmp.eq.s32.totalorder %s16, 0
      %p162 = por %p160, %p161
      %p163 = scmp.ne.s32.totalorder %s155, %s157
      %p164 = scmp.eq.s32.totalorder %s21, 1
      %p165 = por %p163, %p164
      %p166 = scmp.ne.s32.totalorder %s157, %s158
      %p167 = scmp.eq.s32.totalorder %s21, 0
      %p168 = por %p166, %p167
      %p169 = scmp.ne.s32.totalorder %s157, %s158
      %p170 = scmp.eq.s32.totalorder %s22, 1
      %p171 = por %p169, %p170
      %p173 = scmp.ne.s32.totalorder %s158, %s172
      %p174 = scmp.eq.s32.totalorder %s22, 0
      %p175 = por %p173, %p174
      %s176 = ssub.s32 %s16, %s23
      %p177 = scmp.eq.s32.totalorder %s176, 0
      %s179 = sadd.s32 %s178, 1
      %s180 = scalar_select %p177, %s178, %s179
      %p183 = pneg %p177
      %p184 = scmp.eq.s32.totalorder %s16, 1
      %p185 = por %p183, %p184
      %p186 = scmp.ne.s32.totalorder %s178, %s181
      %p187 = scmp.eq.s32.totalorder %s16, 0
      %p188 = por %p186, %p187
      %p189 = scmp.ne.s32.totalorder %s178, %s181
      %p190 = scmp.eq.s32.totalorder %s21, 1
      %p191 = por %p189, %p190
      %p192 = scmp.ne.s32.totalorder %s181, %s182
      %p193 = scmp.eq.s32.totalorder %s21, 0
      %p194 = por %p192, %p193
      %p195 = scmp.ne.s32.totalorder %s181, %s182
      %p196 = scmp.eq.s32.totalorder %s22, 1
      %p197 = por %p195, %p196
      %p199 = scmp.ne.s32.totalorder %s182, %s198
      %p200 = scmp.eq.s32.totalorder %s22, 0
      %p201 = por %p199, %p200
      %p202 = scmp.le.s32.totalorder 1, %s16
      %p203 = scmp.lt.s32.totalorder %s16, 3
      %p204 = pnand %p202, %p203
      %p205 = pneg %p204
      // Predicated region
      $region9: #{tpu_custom_call.1} parent=5 // pred_check
        _
      $region10: #{tpu_custom_call.1} parent=5 // pred_check_branch
        %207 = sbr.rel (%p204) target = $region12
      $region11: #{tpu_custom_call.1} parent=5 // pred_region
        %s208 = ssub.s32 %s16, 1
        // Predicated region
        $region13: #{tpu_custom_call.1} parent=11 // pred_check
          %p209 = pneg %p63
        $region14: #{tpu_custom_call.1} parent=11 // pred_check_branch
          %211 = sbr.rel (%p209) target = $region16
        $region15: #{tpu_custom_call.1} parent=11 // pred_region
          _
        $region16: #{tpu_custom_call.1} parent=11 // pred_fallthru
          _
        // Predicated region
        $region17: #{tpu_custom_call.1} parent=11 // pred_check
          %p212 = pneg %p84
        $region18: #{tpu_custom_call.1} parent=11 // pred_check_branch
          %214 = sbr.rel (%p212) target = $region20
        $region19: #{tpu_custom_call.1} parent=11 // pred_region
          _
        $region20: #{tpu_custom_call.1} parent=11 // pred_fallthru
          _
        // Predicated region
        $region21: #{tpu_custom_call.1} parent=11 // pred_check
          %p215 = pneg %p105
        $region22: #{tpu_custom_call.1} parent=11 // pred_check_branch
          %217 = sbr.rel (%p215) target = $region24
        $region23: #{tpu_custom_call.1} parent=11 // pred_region
          _
        $region24: #{tpu_custom_call.1} parent=11 // pred_fallthru
          _
        // Predicated region
        $region25: #{tpu_custom_call.1} parent=11 // pred_check
          %p218 = pneg %p126
        $region26: #{tpu_custom_call.1} parent=11 // pred_check_branch
          %220 = sbr.rel (%p218) target = $region28
        $region27: #{tpu_custom_call.1} parent=11 // pred_region
          _
        $region28: #{tpu_custom_call.1} parent=11 // pred_fallthru
          _
        // Predicated region
        $region29: #{tpu_custom_call.1} parent=11 // pred_check
          %p221 = pneg %p147
        $region30: #{tpu_custom_call.1} parent=11 // pred_check_branch
          %223 = sbr.rel (%p221) target = $region32
        $region31: #{tpu_custom_call.1} parent=11 // pred_region
          _
        $region32: #{tpu_custom_call.1} parent=11 // pred_fallthru
          _
        // Predicated region
        $region33: #{tpu_custom_call.1} parent=11 // pred_check
          %p224 = pneg %p168
        $region34: #{tpu_custom_call.1} parent=11 // pred_check_branch
          %226 = sbr.rel (%p224) target = $region36
        $region35: #{tpu_custom_call.1} parent=11 // pred_region
          _
        $region36: #{tpu_custom_call.1} parent=11 // pred_fallthru
          _
      $region12: #{tpu_custom_call.1} parent=5 // pred_fallthru
        _
      %p227 = scmp.lt.s32.totalorder %s16, 2
      // Predicated region
      $region37: #{tpu_custom_call.1} parent=5 // pred_check
        %p228 = pneg %p227
      $region38: #{tpu_custom_call.1} parent=5 // pred_check_branch
        %230 = sbr.rel (%p228) target = $region40
      $region39: #{tpu_custom_call.1} parent=5 // pred_region
        // Predicated region
        $region41: #{tpu_custom_call.1} parent=39 // pred_check
          %p231 = pneg %p36
        $region42: #{tpu_custom_call.1} parent=39 // pred_check_branch
          %233 = sbr.rel (%p231) target = $region44
        $region43: #{tpu_custom_call.1} parent=39 // pred_region
          %p234 = scmp.lt.s32.totalorder %s16, 1
          %s235 = scalar_select %p234, %s16, 1
          %s236 = smul.addr %s235, 2
          %s237 = smul.addr %s236, 4
          %s238 = scalar_lea.vmem %s0, %s237
        $region44: #{tpu_custom_call.1} parent=39 // pred_fallthru
          _
      $region40: #{tpu_custom_call.1} parent=5 // pred_fallthru
        _
      %p239 = scmp.le.s32.totalorder 1, %s16
      %p240 = scmp.lt.s32.totalorder %s16, 3
      %p241 = pnand %p239, %p240
      %p242 = pneg %p241
      // Predicated region
      $region45: #{tpu_custom_call.1} parent=5 // pred_check
        _
      $region46: #{tpu_custom_call.1} parent=5 // pred_check_branch
        %244 = sbr.rel (%p241) target = $region48
      $region47: #{tpu_custom_call.1} parent=5 // pred_region
        %s245 = ssub.s32 %s16, 1
        %p246 = scmp.lt.s32.totalorder %s21, 1
        %s247 = scalar_select %p246, %s21, 1
        %s248 = smul.addr %s247, 2
        %s249 = smul.addr %s248, 4
        %s250 = scalar_lea.vmem %s0, %s249
        %p251 = pneg %p42
        %p252 = pneg %p39
        %p253 = pneg %p63
        %p254 = pneg %p60
        %p255 = pneg %p84
        %p256 = pneg %p81
        %p257 = pneg %p105
        %p258 = pneg %p102
        %p259 = pneg %p126
        %p260 = pneg %p123
        %p261 = pneg %p147
        %p262 = pneg %p144
        %p263 = pneg %p168
        %p264 = pneg %p165
        %p265 = pneg %p194
        %p266 = pneg %p191
        %s267 = sand.u32 %s181, 1
        %s268 = scalar_lea.sflag [#allocation4], %s267
        %s269 = sand.u32 %s181, 1
        %s270 = smul.addr %s269, 16
        %s271 = scalar_lea.vmem [#allocation3], %s270
        %p272 = scmp.lt.s32.totalorder %s21, 1
        %s273 = scalar_select %p272, %s21, 1
        %s274 = smul.addr %s273, 2
        %s275 = smul.addr %s274, 4
        %s276 = scalar_lea.vmem %s0, %s275
        %v277 = vld [vmem:[%s276] sm:$0xff]
        %v278 = vld [vmem:[%s1] sm:$0xff]
        %v279 = vld [vmem:[%s1 + $0x8] sm:$0xff]
        %s280 = scalar_lea.vmem %s1, 16
        %v281 = vld [vmem:[%s280] sm:$0xff]
        %v282 = vld [vmem:[%s280 + $0x8] sm:$0xff]
        %v284 = vcombine.high %v277, %v277
        %285 = vrot.lane.b32.xlu0 %v277, 127
        %v286 = vpop.permute.xlu0 %285
        %287 = vrot.lane.b32.xlu0 %v284, 127
        %v288 = vpop.permute.xlu0 %287
        %vm289 = vcmask 1039360
        %v290 = vsel %vm289, %v286, %v288
        %vm291 = vcmask 31744
        %v293 = vsel %vm291, %v281, 0
        %v296 = vsel %vm291, %v282, 0
        %vm298 = vcmask 1043456
        %v299 = vsel %vm298, %v290, 0
        %301 = vmatprep.subr.mxu0 0.0
        %302 = vmatpush1.msra.mxu0 0.0
        %303 = vmatprep.subr.mxu0 0.0
        %304 = vmatpush1.msra.mxu0 0.0
        %305 = vmatprep.subr.mxu0 0.0
        %306 = vmatpush1.msra.mxu0 0.0
        %307 = vmatprep.subr.mxu0 0.0
        %308 = vmatpush1.msra.mxu0 0.0
        %309 = vmatprep.subr.mxu0 0.0
        %310 = vmatpush1.msra.mxu0 0.0
        %311 = vmatprep.subr.mxu0 0.0
        %312 = vmatpush1.msra.mxu0 0.0
        %313 = vmatprep.subr.mxu0 0.0
        %314 = vmatpush1.msra.mxu0 0.0
        %315 = vmatprep.subr.mxu0 0.0
        %316 = vmatpush1.msra.mxu0 0.0
        %317 = vmatprep.subr.mxu0 0.0
        %318 = vmatpush1.msra.mxu0 0.0
        %319 = vmatprep.subr.mxu0 0.0
        %320 = vmatpush1.msra.mxu0 0.0
        %321 = vmatprep.subr.mxu0 0.0
        %322 = vmatpush1.msra.mxu0 0.0
        %323 = vmatprep.subr.mxu0 0.0
        %324 = vmatpush1.msra.mxu0 0.0
        %325 = vmatprep.subr.mxu0 0.0
        %326 = vmatpush1.msra.mxu0 0.0
        %327 = vmatprep.subr.mxu0 0.0
        %328 = vmatpush1.msra.mxu0 0.0
        %329 = vmatprep.subr.mxu0 0.0
        %330 = vmatpush1.msra.mxu0 0.0
        %331 = vmatprep.subr.mxu0 0.0
        %332 = vmatpush1.msra.mxu0 %v299
        %333 = vmatprep.subr.mxu0 0.0
        %334 = vmatpush2.msra.mxu0 0.0
        %335 = vmatprep.subr.mxu0 0.0
        %336 = vmatpush2.msra.mxu0 0.0
        %337 = vmatprep.subr.mxu0 0.0
        %338 = vmatpush2.msra.mxu0 0.0
        %339 = vmatprep.subr.mxu0 0.0
        %340 = vmatpush2.msra.mxu0 0.0
        %341 = vmatprep.subr.mxu0 0.0
        %342 = vmatpush2.msra.mxu0 0.0
        %343 = vmatprep.subr.mxu0 0.0
        %344 = vmatpush2.msra.mxu0 0.0
        %345 = vmatprep.subr.mxu0 0.0
        %346 = vmatpush2.msra.mxu0 0.0
        %347 = vmatprep.subr.mxu0 0.0
        %348 = vmatpush2.msra.mxu0 0.0
        %349 = vmatprep.subr.mxu0 0.0
        %350 = vmatpush2.msra.mxu0 0.0
        %351 = vmatprep.subr.mxu0 0.0
        %352 = vmatpush2.msra.mxu0 0.0
        %353 = vmatprep.subr.mxu0 0.0
        %354 = vmatpush2.msra.mxu0 0.0
        %355 = vmatprep.subr.mxu0 0.0
        %356 = vmatpush2.msra.mxu0 0.0
        %357 = vmatprep.subr.mxu0 0.0
        %358 = vmatpush2.msra.mxu0 0.0
        %359 = vmatprep.subr.mxu0 0.0
        %360 = vmatpush2.msra.mxu0 0.0
        %361 = vmatprep.subr.mxu0 0.0
        %362 = vmatpush2.msra.mxu0 0.0
        %363 = vmatprep.subr.mxu0 0.0
        %364 = vmatpush2.msra.mxu0 0.0
        %365 = vmatprep.mubr.f32.mxu0 0.0
        %366 = vmatmul.mubr.f32.gmra.mxu0 %v293
        %v367 = vpop.f32.mrf.mxu0
        %v368 = vadd.f32 0.0, %v367
        %v369 = vpop.f32.mrf.mxu0
        %370 = vmatprep.mubr.f32.mxu0 0.0
        %371 = vmatmul.mubr.f32.gmra.mxu0 %v296
        %v372 = vpop.f32.mrf.mxu0
        %v373 = vadd.f32 0.0, %v372
        %v374 = vpop.f32.mrf.mxu0
        %375 = vdwg.mxu0
        %v377 = vsel %vm291, %v278, 0
        %v380 = vsel %vm291, %v279, 0
        %v382 = vsel %vm298, %v277, 0
        %384 = vmatprep.subr.mxu0 0.0
        %385 = vmatpush1.msra.mxu0 0.0
        %386 = vmatprep.subr.mxu0 0.0
        %387 = vmatpush1.msra.mxu0 0.0
        %388 = vmatprep.subr.mxu0 0.0
        %389 = vmatpush1.msra.mxu0 0.0
        %390 = vmatprep.subr.mxu0 0.0
        %391 = vmatpush1.msra.mxu0 0.0
        %392 = vmatprep.subr.mxu0 0.0
        %393 = vmatpush1.msra.mxu0 0.0
        %394 = vmatprep.subr.mxu0 0.0
        %395 = vmatpush1.msra.mxu0 0.0
        %396 = vmatprep.subr.mxu0 0.0
        %397 = vmatpush1.msra.mxu0 0.0
        %398 = vmatprep.subr.mxu0 0.0
        %399 = vmatpush1.msra.mxu0 0.0
        %400 = vmatprep.subr.mxu0 0.0
        %401 = vmatpush1.msra.mxu0 0.0
        %402 = vmatprep.subr.mxu0 0.0
        %403 = vmatpush1.msra.mxu0 0.0
        %404 = vmatprep.subr.mxu0 0.0
        %405 = vmatpush1.msra.mxu0 0.0
        %406 = vmatprep.subr.mxu0 0.0
        %407 = vmatpush1.msra.mxu0 0.0
        %408 = vmatprep.subr.mxu0 0.0
        %409 = vmatpush1.msra.mxu0 0.0
        %410 = vmatprep.subr.mxu0 0.0
        %411 = vmatpush1.msra.mxu0 0.0
        %412 = vmatprep.subr.mxu0 0.0
        %413 = vmatpush1.msra.mxu0 0.0
        %414 = vmatprep.subr.mxu0 0.0
        %415 = vmatpush1.msra.mxu0 %v382
        %416 = vmatprep.subr.mxu0 0.0
        %417 = vmatpush2.msra.mxu0 0.0
        %418 = vmatprep.subr.mxu0 0.0
        %419 = vmatpush2.msra.mxu0 0.0
        %420 = vmatprep.subr.mxu0 0.0
        %421 = vmatpush2.msra.mxu0 0.0
        %422 = vmatprep.subr.mxu0 0.0
        %423 = vmatpush2.msra.mxu0 0.0
        %424 = vmatprep.subr.mxu0 0.0
        %425 = vmatpush2.msra.mxu0 0.0
        %426 = vmatprep.subr.mxu0 0.0
        %427 = vmatpush2.msra.mxu0 0.0
        %428 = vmatprep.subr.mxu0 0.0
        %429 = vmatpush2.msra.mxu0 0.0
        %430 = vmatprep.subr.mxu0 0.0
        %431 = vmatpush2.msra.mxu0 0.0
        %432 = vmatprep.subr.mxu0 0.0
        %433 = vmatpush2.msra.mxu0 0.0
        %434 = vmatprep.subr.mxu0 0.0
        %435 = vmatpush2.msra.mxu0 0.0
        %436 = vmatprep.subr.mxu0 0.0
        %437 = vmatpush2.msra.mxu0 0.0
        %438 = vmatprep.subr.mxu0 0.0
        %439 = vmatpush2.msra.mxu0 0.0
        %440 = vmatprep.subr.mxu0 0.0
        %441 = vmatpush2.msra.mxu0 0.0
        %442 = vmatprep.subr.mxu0 0.0
        %443 = vmatpush2.msra.mxu0 0.0
        %444 = vmatprep.subr.mxu0 0.0
        %445 = vmatpush2.msra.mxu0 0.0
        %446 = vmatprep.subr.mxu0 0.0
        %447 = vmatpush2.msra.mxu0 0.0
        %448 = vmatprep.mubr.f32.mxu0 0.0
        %449 = vmatmul.mubr.f32.gmra.mxu0 %v377
        %v450 = vpop.f32.mrf.mxu0
        %v451 = vadd.f32 %v368, %v450
        %v452 = vpop.f32.mrf.mxu0
        %453 = vmatprep.mubr.f32.mxu0 0.0
        %454 = vmatmul.mubr.f32.gmra.mxu0 %v380
        %v455 = vpop.f32.mrf.mxu0
        %v456 = vadd.f32 %v373, %v455
        %v457 = vpop.f32.mrf.mxu0
        %458 = vdwg.mxu0
        %s459 = scalar_lea.vmem %s1, 32
        %v460 = vld [vmem:[%s459] sm:$0xff]
        %v461 = vld [vmem:[%s459 + $0x8] sm:$0xff]
        %462 = vrot.lane.b32.xlu0 %v277, 126
        %v463 = vpop.permute.xlu0 %462
        %464 = vrot.lane.b32.xlu0 %v284, 126
        %v465 = vpop.permute.xlu0 %464
        %vm466 = vcmask 1031168
        %v467 = vsel %vm466, %v463, %v465
        %v469 = vsel %vm291, %v460, 0
        %v472 = vsel %vm291, %v461, 0
        %v474 = vsel %vm298, %v467, 0
        %476 = vmatprep.subr.mxu0 0.0
        %477 = vmatpush1.msra.mxu0 0.0
        %478 = vmatprep.subr.mxu0 0.0
        %479 = vmatpush1.msra.mxu0 0.0
        %480 = vmatprep.subr.mxu0 0.0
        %481 = vmatpush1.msra.mxu0 0.0
        %482 = vmatprep.subr.mxu0 0.0
        %483 = vmatpush1.msra.mxu0 0.0
        %484 = vmatprep.subr.mxu0 0.0
        %485 = vmatpush1.msra.mxu0 0.0
        %486 = vmatprep.subr.mxu0 0.0
        %487 = vmatpush1.msra.mxu0 0.0
        %488 = vmatprep.subr.mxu0 0.0
        %489 = vmatpush1.msra.mxu0 0.0
        %490 = vmatprep.subr.mxu0 0.0
        %491 = vmatpush1.msra.mxu0 0.0
        %492 = vmatprep.subr.mxu0 0.0
        %493 = vmatpush1.msra.mxu0 0.0
        %494 = vmatprep.subr.mxu0 0.0
        %495 = vmatpush1.msra.mxu0 0.0
        %496 = vmatprep.subr.mxu0 0.0
        %497 = vmatpush1.msra.mxu0 0.0
        %498 = vmatprep.subr.mxu0 0.0
        %499 = vmatpush1.msra.mxu0 0.0
        %500 = vmatprep.subr.mxu0 0.0
        %501 = vmatpush1.msra.mxu0 0.0
        %502 = vmatprep.subr.mxu0 0.0
        %503 = vmatpush1.msra.mxu0 0.0
        %504 = vmatprep.subr.mxu0 0.0
        %505 = vmatpush1.msra.mxu0 0.0
        %506 = vmatprep.subr.mxu0 0.0
        %507 = vmatpush1.msra.mxu0 %v474
        %508 = vmatprep.subr.mxu0 0.0
        %509 = vmatpush2.msra.mxu0 0.0
        %510 = vmatprep.subr.mxu0 0.0
        %511 = vmatpush2.msra.mxu0 0.0
        %512 = vmatprep.subr.mxu0 0.0
        %513 = vmatpush2.msra.mxu0 0.0
        %514 = vmatprep.subr.mxu0 0.0
        %515 = vmatpush2.msra.mxu0 0.0
        %516 = vmatprep.subr.mxu0 0.0
        %517 = vmatpush2.msra.mxu0 0.0
        %518 = vmatprep.subr.mxu0 0.0
        %519 = vmatpush2.msra.mxu0 0.0
        %520 = vmatprep.subr.mxu0 0.0
        %521 = vmatpush2.msra.mxu0 0.0
        %522 = vmatprep.subr.mxu0 0.0
        %523 = vmatpush2.msra.mxu0 0.0
        %524 = vmatprep.subr.mxu0 0.0
        %525 = vmatpush2.msra.mxu0 0.0
        %526 = vmatprep.subr.mxu0 0.0
        %527 = vmatpush2.msra.mxu0 0.0
        %528 = vmatprep.subr.mxu0 0.0
        %529 = vmatpush2.msra.mxu0 0.0
        %530 = vmatprep.subr.mxu0 0.0
        %531 = vmatpush2.msra.mxu0 0.0
        %532 = vmatprep.subr.mxu0 0.0
        %533 = vmatpush2.msra.mxu0 0.0
        %534 = vmatprep.subr.mxu0 0.0
        %535 = vmatpush2.msra.mxu0 0.0
        %536 = vmatprep.subr.mxu0 0.0
        %537 = vmatpush2.msra.mxu0 0.0
        %538 = vmatprep.subr.mxu0 0.0
        %539 = vmatpush2.msra.mxu0 0.0
        %540 = vmatprep.mubr.f32.mxu0 0.0
        %541 = vmatmul.mubr.f32.gmra.mxu0 %v469
        %v542 = vpop.f32.mrf.mxu0
        %v543 = vadd.f32 0.0, %v542
        %v544 = vpop.f32.mrf.mxu0
        %545 = vmatprep.mubr.f32.mxu0 0.0
        %546 = vmatmul.mubr.f32.gmra.mxu0 %v472
        %v547 = vpop.f32.mrf.mxu0
        %v548 = vadd.f32 0.0, %v547
        %v549 = vpop.f32.mrf.mxu0
        %550 = vdwg.mxu0
        %v551 = vadd.f32 %v451, %v543
        %v552 = vadd.f32 %v456, %v548
        %v553 = vlaneseq
        %v554 = vand.u32 %v553, 127
        %vm555 = vcmp.lt.s32.totalorder %v554, 16
        %v556 = vsel %vm555, 1, 0
        %v557 = vcvt.s32.f32 %v556
        %v558 = vmul.f32 %v551, %v557
        %v559 = vmul.f32 %v552, %v557
        %560 = vst [vmem:[#allocation2] sm:$0xff] %v558
        %561 = vst [vmem:[#allocation2 + $0x8] sm:$0xff] %v559
        %562 = vadd.xlane.f32.xlu0 %v558
        %v563 = vpop.xlane.xlu0 %562
        %564 = vadd.xlane.f32.xlu0 %v559
        %v565 = vpop.xlane.xlu0 %564
        %v566 = vld [vmem:[%s2] sm:$0xff]
        %v567 = vld [vmem:[%s2 + $0x8] sm:$0xff]
        %v568 = vmul.f32 %v566, 16.0
        %v569 = vmul.f32 %v567, 16.0
        %v570 = vadd.f32 %v563, %v568
        %v571 = vadd.f32 %v565, %v569
        %v572 = vld [vmem:[%s5] sm:$0xff]
        %vm573 = vcmask 130048
        %v575 = vsel %vm573, %v572, 0
        %577 = vmatprep.subr.mxu0 0.0
        %578 = vmatpush1.msra.mxu0 0.0
        %579 = vmatprep.subr.mxu0 0.0
        %580 = vmatpush1.msra.mxu0 0.0
        %581 = vmatprep.subr.mxu0 0.0
        %582 = vmatpush1.msra.mxu0 0.0
        %583 = vmatprep.subr.mxu0 0.0
        %584 = vmatpush1.msra.mxu0 0.0
        %585 = vmatprep.subr.mxu0 0.0
        %586 = vmatpush1.msra.mxu0 0.0
        %587 = vmatprep.subr.mxu0 0.0
        %588 = vmatpush1.msra.mxu0 0.0
        %589 = vmatprep.subr.mxu0 0.0
        %590 = vmatpush1.msra.mxu0 0.0
        %591 = vmatprep.subr.mxu0 0.0
        %592 = vmatpush1.msra.mxu0 0.0
        %593 = vmatprep.subr.mxu0 0.0
        %594 = vmatpush1.msra.mxu0 0.0
        %595 = vmatprep.subr.mxu0 0.0
        %596 = vmatpush1.msra.mxu0 0.0
        %597 = vmatprep.subr.mxu0 0.0
        %598 = vmatpush1.msra.mxu0 0.0
        %599 = vmatprep.subr.mxu0 0.0
        %600 = vmatpush1.msra.mxu0 0.0
        %601 = vmatprep.subr.mxu0 0.0
        %602 = vmatpush1.msra.mxu0 0.0
        %603 = vmatprep.subr.mxu0 0.0
        %604 = vmatpush1.msra.mxu0 0.0
        %605 = vmatprep.subr.mxu0 0.0
        %606 = vmatpush1.msra.mxu0 %v571
        %607 = vmatprep.subr.mxu0 0.0
        %608 = vmatpush1.msra.mxu0 %v570
        %609 = vmatprep.subr.mxu0 0.0
        %610 = vmatpush2.msra.mxu0 0.0
        %611 = vmatprep.subr.mxu0 0.0
        %612 = vmatpush2.msra.mxu0 0.0
        %613 = vmatprep.subr.mxu0 0.0
        %614 = vmatpush2.msra.mxu0 0.0
        %615 = vmatprep.subr.mxu0 0.0
        %616 = vmatpush2.msra.mxu0 0.0
        %617 = vmatprep.subr.mxu0 0.0
        %618 = vmatpush2.msra.mxu0 0.0
        %619 = vmatprep.subr.mxu0 0.0
        %620 = vmatpush2.msra.mxu0 0.0
        %621 = vmatprep.subr.mxu0 0.0
        %622 = vmatpush2.msra.mxu0 0.0
        %623 = vmatprep.subr.mxu0 0.0
        %624 = vmatpush2.msra.mxu0 0.0
        %625 = vmatprep.subr.mxu0 0.0
        %626 = vmatpush2.msra.mxu0 0.0
        %627 = vmatprep.subr.mxu0 0.0
        %628 = vmatpush2.msra.mxu0 0.0
        %629 = vmatprep.subr.mxu0 0.0
        %630 = vmatpush2.msra.mxu0 0.0
        %631 = vmatprep.subr.mxu0 0.0
        %632 = vmatpush2.msra.mxu0 0.0
        %633 = vmatprep.subr.mxu0 0.0
        %634 = vmatpush2.msra.mxu0 0.0
        %635 = vmatprep.subr.mxu0 0.0
        %636 = vmatpush2.msra.mxu0 0.0
        %637 = vmatprep.subr.mxu0 0.0
        %638 = vmatpush2.msra.mxu0 0.0
        %639 = vmatprep.subr.mxu0 0.0
        %640 = vmatpush2.msra.mxu0 0.0
        %641 = vmatprep.mubr.f32.mxu0 0.0
        %642 = vmatmul.mubr.f32.gmra.mxu0 %v575
        %v643 = vpop.f32.mrf.mxu0
        %v644 = vadd.f32 0.0, %v643
        %v645 = vpop.f32.mrf.mxu0
        %646 = vdwg.mxu0
        %v647 = vld [vmem:[%s6] sm:$0xff]
        %v648 = vld [vmem:[%s6 + $0x8] sm:$0xff]
        %vm649 = vcmask 64512
        %v651 = vsel %vm649, %v647, 0
        %v654 = vsel %vm649, %v648, 0
        %656 = vmatprep.subr.mxu0 0.0
        %657 = vmatpush1.msra.mxu0 0.0
        %658 = vmatprep.subr.mxu0 0.0
        %659 = vmatpush1.msra.mxu0 0.0
        %660 = vmatprep.subr.mxu0 0.0
        %661 = vmatpush1.msra.mxu0 0.0
        %662 = vmatprep.subr.mxu0 0.0
        %663 = vmatpush1.msra.mxu0 0.0
        %664 = vmatprep.subr.mxu0 0.0
        %665 = vmatpush1.msra.mxu0 0.0
        %666 = vmatprep.subr.mxu0 0.0
        %667 = vmatpush1.msra.mxu0 0.0
        %668 = vmatprep.subr.mxu0 0.0
        %669 = vmatpush1.msra.mxu0 0.0
        %670 = vmatprep.subr.mxu0 0.0
        %671 = vmatpush1.msra.mxu0 0.0
        %672 = vmatprep.subr.mxu0 0.0
        %673 = vmatpush1.msra.mxu0 0.0
        %674 = vmatprep.subr.mxu0 0.0
        %675 = vmatpush1.msra.mxu0 0.0
        %676 = vmatprep.subr.mxu0 0.0
        %677 = vmatpush1.msra.mxu0 0.0
        %678 = vmatprep.subr.mxu0 0.0
        %679 = vmatpush1.msra.mxu0 0.0
        %680 = vmatprep.subr.mxu0 0.0
        %681 = vmatpush1.msra.mxu0 0.0
        %682 = vmatprep.subr.mxu0 0.0
        %683 = vmatpush1.msra.mxu0 0.0
        %684 = vmatprep.subr.mxu0 0.0
        %685 = vmatpush1.msra.mxu0 0.0
        %686 = vmatprep.subr.mxu0 0.0
        %687 = vmatpush1.msra.mxu0 %v644
        %688 = vmatprep.subr.mxu0 0.0
        %689 = vmatpush2.msra.mxu0 0.0
        %690 = vmatprep.subr.mxu0 0.0
        %691 = vmatpush2.msra.mxu0 0.0
        %692 = vmatprep.subr.mxu0 0.0
        %693 = vmatpush2.msra.mxu0 0.0
        %694 = vmatprep.subr.mxu0 0.0
        %695 = vmatpush2.msra.mxu0 0.0
        %696 = vmatprep.subr.mxu0 0.0
        %697 = vmatpush2.msra.mxu0 0.0
        %698 = vmatprep.subr.mxu0 0.0
        %699 = vmatpush2.msra.mxu0 0.0
        %700 = vmatprep.subr.mxu0 0.0
        %701 = vmatpush2.msra.mxu0 0.0
        %702 = vmatprep.subr.mxu0 0.0
        %703 = vmatpush2.msra.mxu0 0.0
        %704 = vmatprep.subr.mxu0 0.0
        %705 = vmatpush2.msra.mxu0 0.0
        %706 = vmatprep.subr.mxu0 0.0
        %707 = vmatpush2.msra.mxu0 0.0
        %708 = vmatprep.subr.mxu0 0.0
        %709 = vmatpush2.msra.mxu0 0.0
        %710 = vmatprep.subr.mxu0 0.0
        %711 = vmatpush2.msra.mxu0 0.0
        %712 = vmatprep.subr.mxu0 0.0
        %713 = vmatpush2.msra.mxu0 0.0
        %714 = vmatprep.subr.mxu0 0.0
        %715 = vmatpush2.msra.mxu0 0.0
        %716 = vmatprep.subr.mxu0 0.0
        %717 = vmatpush2.msra.mxu0 0.0
        %718 = vmatprep.subr.mxu0 0.0
        %719 = vmatpush2.msra.mxu0 0.0
        %720 = vmatprep.mubr.f32.mxu0 0.0
        %721 = vmatmul.mubr.f32.gmra.mxu0 %v651
        %v722 = vpop.f32.mrf.mxu0
        %v723 = vadd.f32 0.0, %v722
        %v724 = vpop.f32.mrf.mxu0
        %725 = vmatprep.mubr.f32.mxu0 0.0
        %726 = vmatmul.mubr.f32.gmra.mxu0 %v654
        %v727 = vpop.f32.mrf.mxu0
        %v728 = vadd.f32 0.0, %v727
        %v729 = vpop.f32.mrf.mxu0
        %730 = vdwg.mxu0
        %v731 = vsub.f32 %v723, %v566
        %v732 = vsub.f32 %v728, %v567
        %734 = vset.pattern.permute.xlu0 0
        %735 = vperm.xlu0 %734, %v731
        %v736 = vpop.permute.xlu0 %735
        %739 = vset.pattern.permute.xlu0 0
        %740 = vperm.xlu0 %739, %v732
        %v741 = vpop.permute.xlu0 %740
        %v743 = vsub.f32 %v558, %v736
        %v744 = vsub.f32 %v559, %v741
        %v745 = vmul.f32 %v743, %v557
        %v746 = vmul.f32 %v744, %v557
        %v747 = vmul.f32 %v745, %v745
        %v748 = vmul.f32 %v746, %v746
        %749 = vadd.xlane.f32.xlu0 %v747
        %v750 = vpop.xlane.xlu0 %749
        %751 = vadd.xlane.f32.xlu0 %v748
        %v752 = vpop.xlane.xlu0 %751
        %753 = vmatprep.subr.mxu0 0.0
        %754 = vmatpush1.msra.mxu0 0.0
        %755 = vmatprep.subr.mxu0 0.0
        %756 = vmatpush1.msra.mxu0 0.0
        %757 = vmatprep.subr.mxu0 0.0
        %758 = vmatpush1.msra.mxu0 0.0
        %759 = vmatprep.subr.mxu0 0.0
        %760 = vmatpush1.msra.mxu0 0.0
        %761 = vmatprep.subr.mxu0 0.0
        %762 = vmatpush1.msra.mxu0 0.0
        %763 = vmatprep.subr.mxu0 0.0
        %764 = vmatpush1.msra.mxu0 0.0
        %765 = vmatprep.subr.mxu0 0.0
        %766 = vmatpush1.msra.mxu0 0.0
        %767 = vmatprep.subr.mxu0 0.0
        %768 = vmatpush1.msra.mxu0 0.0
        %769 = vmatprep.subr.mxu0 0.0
        %770 = vmatpush1.msra.mxu0 0.0
        %771 = vmatprep.subr.mxu0 0.0
        %772 = vmatpush1.msra.mxu0 0.0
        %773 = vmatprep.subr.mxu0 0.0
        %774 = vmatpush1.msra.mxu0 0.0
        %775 = vmatprep.subr.mxu0 0.0
        %776 = vmatpush1.msra.mxu0 0.0
        %777 = vmatprep.subr.mxu0 0.0
        %778 = vmatpush1.msra.mxu0 0.0
        %779 = vmatprep.subr.mxu0 0.0
        %780 = vmatpush1.msra.mxu0 0.0
        %781 = vmatprep.subr.mxu0 0.0
        %782 = vmatpush1.msra.mxu0 %v752
        %783 = vmatprep.subr.mxu0 0.0
        %784 = vmatpush1.msra.mxu0 %v750
        %785 = vmatprep.subr.mxu0 0.0
        %786 = vmatpush2.msra.mxu0 0.0
        %787 = vmatprep.subr.mxu0 0.0
        %788 = vmatpush2.msra.mxu0 0.0
        %789 = vmatprep.subr.mxu0 0.0
        %790 = vmatpush2.msra.mxu0 0.0
        %791 = vmatprep.subr.mxu0 0.0
        %792 = vmatpush2.msra.mxu0 0.0
        %793 = vmatprep.subr.mxu0 0.0
        %794 = vmatpush2.msra.mxu0 0.0
        %795 = vmatprep.subr.mxu0 0.0
        %796 = vmatpush2.msra.mxu0 0.0
        %797 = vmatprep.subr.mxu0 0.0
        %798 = vmatpush2.msra.mxu0 0.0
        %799 = vmatprep.subr.mxu0 0.0
        %800 = vmatpush2.msra.mxu0 0.0
        %801 = vmatprep.subr.mxu0 0.0
        %802 = vmatpush2.msra.mxu0 0.0
        %803 = vmatprep.subr.mxu0 0.0
        %804 = vmatpush2.msra.mxu0 0.0
        %805 = vmatprep.subr.mxu0 0.0
        %806 = vmatpush2.msra.mxu0 0.0
        %807 = vmatprep.subr.mxu0 0.0
        %808 = vmatpush2.msra.mxu0 0.0
        %809 = vmatprep.subr.mxu0 0.0
        %810 = vmatpush2.msra.mxu0 0.0
        %811 = vmatprep.subr.mxu0 0.0
        %812 = vmatpush2.msra.mxu0 0.0
        %813 = vmatprep.subr.mxu0 0.0
        %814 = vmatpush2.msra.mxu0 0.0
        %815 = vmatprep.subr.mxu0 0.0
        %816 = vmatpush2.msra.mxu0 0.0
        %817 = vmatprep.mubr.f32.mxu0 0.0
        %818 = vmatmul.mubr.f32.gmra.mxu0 %v575
        %v819 = vpop.f32.mrf.mxu0
        %v820 = vadd.f32 0.0, %v819
        %v821 = vpop.f32.mrf.mxu0
        %822 = vdwg.mxu0
        %v823 = vld [vmem:[%s3] sm:$0xff]
        %v824 = vld [vmem:[%s3 + $0x8] sm:$0xff]
        %825 = vmatprep.subr.mxu0 0.0
        %826 = vmatpush1.msra.mxu0 0.0
        %827 = vmatprep.subr.mxu0 0.0
        %828 = vmatpush1.msra.mxu0 0.0
        %829 = vmatprep.subr.mxu0 0.0
        %830 = vmatpush1.msra.mxu0 0.0
        %831 = vmatprep.subr.mxu0 0.0
        %832 = vmatpush1.msra.mxu0 0.0
        %833 = vmatprep.subr.mxu0 0.0
        %834 = vmatpush1.msra.mxu0 0.0
        %835 = vmatprep.subr.mxu0 0.0
        %836 = vmatpush1.msra.mxu0 0.0
        %837 = vmatprep.subr.mxu0 0.0
        %838 = vmatpush1.msra.mxu0 0.0
        %839 = vmatprep.subr.mxu0 0.0
        %840 = vmatpush1.msra.mxu0 0.0
        %841 = vmatprep.subr.mxu0 0.0
        %842 = vmatpush1.msra.mxu0 0.0
        %843 = vmatprep.subr.mxu0 0.0
        %844 = vmatpush1.msra.mxu0 0.0
        %845 = vmatprep.subr.mxu0 0.0
        %846 = vmatpush1.msra.mxu0 0.0
        %847 = vmatprep.subr.mxu0 0.0
        %848 = vmatpush1.msra.mxu0 0.0
        %849 = vmatprep.subr.mxu0 0.0
        %850 = vmatpush1.msra.mxu0 0.0
        %851 = vmatprep.subr.mxu0 0.0
        %852 = vmatpush1.msra.mxu0 0.0
        %853 = vmatprep.subr.mxu0 0.0
        %854 = vmatpush1.msra.mxu0 0.0
        %855 = vmatprep.subr.mxu0 0.0
        %856 = vmatpush1.msra.mxu0 %v820
        %857 = vmatprep.subr.mxu0 0.0
        %858 = vmatpush2.msra.mxu0 0.0
        %859 = vmatprep.subr.mxu0 0.0
        %860 = vmatpush2.msra.mxu0 0.0
        %861 = vmatprep.subr.mxu0 0.0
        %862 = vmatpush2.msra.mxu0 0.0
        %863 = vmatprep.subr.mxu0 0.0
        %864 = vmatpush2.msra.mxu0 0.0
        %865 = vmatprep.subr.mxu0 0.0
        %866 = vmatpush2.msra.mxu0 0.0
        %867 = vmatprep.subr.mxu0 0.0
        %868 = vmatpush2.msra.mxu0 0.0
        %869 = vmatprep.subr.mxu0 0.0
        %870 = vmatpush2.msra.mxu0 0.0
        %871 = vmatprep.subr.mxu0 0.0
        %872 = vmatpush2.msra.mxu0 0.0
        %873 = vmatprep.subr.mxu0 0.0
        %874 = vmatpush2.msra.mxu0 0.0
        %875 = vmatprep.subr.mxu0 0.0
        %876 = vmatpush2.msra.mxu0 0.0
        %877 = vmatprep.subr.mxu0 0.0
        %878 = vmatpush2.msra.mxu0 0.0
        %879 = vmatprep.subr.mxu0 0.0
        %880 = vmatpush2.msra.mxu0 0.0
        %881 = vmatprep.subr.mxu0 0.0
        %882 = vmatpush2.msra.mxu0 0.0
        %883 = vmatprep.subr.mxu0 0.0
        %884 = vmatpush2.msra.mxu0 0.0
        %885 = vmatprep.subr.mxu0 0.0
        %886 = vmatpush2.msra.mxu0 0.0
        %887 = vmatprep.subr.mxu0 0.0
        %888 = vmatpush2.msra.mxu0 0.0
        %889 = vmatprep.mubr.f32.mxu0 0.0
        %890 = vmatmul.mubr.f32.gmra.mxu0 %v651
        %v891 = vpop.f32.mrf.mxu0
        %v892 = vadd.f32 1e-05, %v891
        %v893 = vpop.f32.mrf.mxu0
        %894 = vmatprep.mubr.f32.mxu0 0.0
        %895 = vmatmul.mubr.f32.gmra.mxu0 %v654
        %v896 = vpop.f32.mrf.mxu0
        %v897 = vadd.f32 1e-05, %v896
        %v898 = vpop.f32.mrf.mxu0
        %899 = vdwg.mxu0
        %v900 = vrsqrt.pop %v892
        %v901 = vrsqrt.pop %v897
        %v902 = vmul.f32 %v823, %v900
        %v903 = vmul.f32 %v824, %v901
        %v904 = vld [vmem:[%s4] sm:$0xff]
        %v905 = vld [vmem:[%s4 + $0x8] sm:$0xff]
        %v906 = vld [vmem:[#allocation2] sm:$0xff]
        %v907 = vld [vmem:[#allocation2 + $0x8] sm:$0xff]
        %v908 = vsub.f32 %v906, %v736
        %v909 = vsub.f32 %v907, %v741
        %911 = vset.pattern.permute.xlu0 0
        %912 = vperm.xlu0 %911, %v902
        %v913 = vpop.permute.xlu0 %912
        %916 = vset.pattern.permute.xlu0 0
        %917 = vperm.xlu0 %916, %v903
        %v918 = vpop.permute.xlu0 %917
        %v920 = vmul.f32 %v908, %v913
        %v921 = vmul.f32 %v909, %v918
        %923 = vset.pattern.permute.xlu0 0
        %924 = vperm.xlu0 %923, %v904
        %v925 = vpop.permute.xlu0 %924
        %928 = vset.pattern.permute.xlu0 0
        %929 = vperm.xlu0 %928, %v905
        %v930 = vpop.permute.xlu0 %929
        %v932 = vadd.f32 %v920, %v925
        %v933 = vadd.f32 %v921, %v930
        %v934 = vmin.f32 %v932, 20.0
        %v935 = vmin.f32 %v933, 20.0
        %v936 = vmul.f32 %v934, 1.442695
        %v937 = vpow.pop %v936
        %v938 = vmul.f32 %v935, 1.442695
        %v939 = vpow.pop %v938
        %v940 = vadd.f32 %v937, 2.0
        %v941 = vadd.f32 %v939, 2.0
        %v942 = vmul.f32 %v937, %v940
        %v943 = vmul.f32 %v939, %v941
        %v944 = vadd.f32 %v942, 2.0
        %v945 = vadd.f32 %v943, 2.0
        %v946 = vrcp.pop %v944
        %v947 = vrcp.pop %v945
        %v948 = vmul.f32 %v944, %v946
        %v949 = vmul.f32 %v945, %v947
        %v950 = vsub.f32 2.0, %v948
        %v951 = vsub.f32 2.0, %v949
        %v952 = vmul.f32 %v946, %v950
        %v953 = vmul.f32 %v947, %v951
        %vm954 = vcmp.gt.f32.partialorder %v932, 20.0
        %vm955 = vcmp.gt.f32.partialorder %v933, 20.0
        %v956 = vmul.f32 %v932, %v942
        %v957 = vmul.f32 %v933, %v943
        %v958 = vmul.f32 %v956, %v952
        %v959 = vmul.f32 %v957, %v953
        %v960 = vsel %vm954, %v932, %v958
        %v961 = vsel %vm955, %v933, %v959
        %962 = vst.msk [vmem:[%s271] sm:$0xff] %vm573, %v960
        %963 = vst.msk [vmem:[%s271 + $0x8] sm:$0xff] %vm573, %v961
        %s964 = sand.u32 %s181, 1
        %s965 = scalar_lea.sflag [#allocation4], %s964
        %s966 = sand.u32 %s181, 1
        %s967 = smul.addr %s966, 16
        %s968 = scalar_lea.vmem [#allocation3], %s967
        // Predicated region
        $region49: #{tpu_custom_call.1} parent=47 // pred_check
          %p969 = pneg %p191
        $region50: #{tpu_custom_call.1} parent=47 // pred_check_branch
          %971 = sbr.rel (%p969) target = $region52
        $region51: #{tpu_custom_call.1} parent=47 // pred_region
          %s973 = ssub.s32 256, 256
          %974 = vsyncadd %s965, %s973
          %s975 = smul.addr %s21, 2
          %s976 = smul.addr %s975, 128
          %s977 = scalar_lea.hbm %s7, %s976
          %s978 = sshll.u32 %s968, 4
          %s979 = int_to_ptr.vmem [resolvable:$true] %s978
          %984 = dma.vmem_to_hbm [thread:$0]  %s979, 256, %s977, %s965, 128, 128, 8
        $region52: #{tpu_custom_call.1} parent=47 // pred_fallthru
          _
      $region48: #{tpu_custom_call.1} parent=5 // pred_fallthru
        _
      %p985 = scmp.le.s32.totalorder 2, %s16
      // Predicated region
      $region53: #{tpu_custom_call.1} parent=5 // pred_check
        %p986 = pneg %p985
      $region54: #{tpu_custom_call.1} parent=5 // pred_check_branch
        %988 = sbr.rel (%p986) target = $region56
      $region55: #{tpu_custom_call.1} parent=5 // pred_region
        %s989 = ssub.s32 %s16, 2
        // Predicated region
        $region57: #{tpu_custom_call.1} parent=55 // pred_check
          %p990 = pneg %p197
        $region58: #{tpu_custom_call.1} parent=55 // pred_check_branch
          %992 = sbr.rel (%p990) target = $region60
        $region59: #{tpu_custom_call.1} parent=55 // pred_region
          %s993 = sand.u32 %s182, 1
          %s994 = scalar_lea.sflag [#allocation4], %s993
          %s995 = sand.u32 %s182, 1
          %s996 = smul.addr %s995, 16
          %s997 = scalar_lea.vmem [#allocation3], %s996
          %998 = dma.done %s994, 256
        $region60: #{tpu_custom_call.1} parent=55 // pred_fallthru
          _
      $region56: #{tpu_custom_call.1} parent=5 // pred_fallthru
        _
    $region6: #{tpu_custom_call.1} parent=1 // loop_footer
      %s20 = sadd.s32 1, %s16
    $region7: #{tpu_custom_call.1} parent=1 // loop_footer_branch
      %15 = sbr.rel target = $region3
    $region8: #{tpu_custom_call.1} parent=1 // loop_exit
      _
    %999 = vsyncpa [#allocation4], 1
    %s1000 = scalar_lea.sflag [#allocation4], 1
    %1001 = vsyncpa %s1000, 1

</llo_original>
